<compile_context>
chip_gen: v7x
topology: tpu7x:2x2x1
jax: 0.10.0
libtpu: 0.0.40
codegen_flags: <defaults>
</compile_context>

<pallas_src>
import jax
import jax.numpy as jnp
from jax.experimental import pallas as pl
from jax.experimental.pallas import tpu as pltpu


def _round_up(x, m):
    return ((x + m - 1) // m) * m


def _cdiv(a, b):
    return -(-a // b)


def _linear_softmax_kernel(x_ref, w_ref, b_ref, o_ref):
    # x_ref: (TB, Ep)  w_ref: (Ep, Lp)  b_ref: (1, Lp) f32  o_ref: (TB, Lp)
    # MXU matmul in the operands' native dtype with f32 accumulation.
    logits = jnp.dot(x_ref[...], w_ref[...], preferred_element_type=jnp.float32)
    logits = logits + b_ref[...]  # bias kept in f32; padded labels carry -1e30

    # Softmax over the (padded) labels axis; padded classes carry -1e30 bias so
    # exp() underflows to exactly 0 and they contribute nothing. All math in f32.
    m = jnp.max(logits, axis=-1, keepdims=True)
    e = jnp.exp(logits - m)
    denom = jnp.sum(e, axis=-1, keepdims=True)
    # Exact division (NOT approx reciprocal): rows sum to 1 to f32 precision.
    o_ref[...] = (e / denom).astype(o_ref.dtype)


def linear_multi_classifier(extras, weight, bias, *, block_b=2048):
    """extras: [B, E], weight: [L, E] (PyTorch Linear layout), bias: [L] -> proba [B, L]."""
    B, E = extras.shape
    L, E2 = weight.shape
    assert E == E2, (E, E2)
    dtype = extras.dtype

    # --- Layout plumbing in the wrapper (folded into HBM->VMEM DMA) ---
    Ep = _round_up(max(E, 8), 8)          # sublane-aligned feature axis
    Lp = _round_up(max(L, 128), 128)      # lane-dense labels axis
    Bp8 = _round_up(max(B, 8), 8)

    # Balanced batch tiling: n roughly-equal, 8-aligned tiles (padding <= 8*n-?
    # rows total, vs up to TB-8 with round_up(B, TB)).  When there is enough
    # work, force an even tile count so both v7x TensorCores get batch tiles.
    n = max(1, _cdiv(Bp8, block_b))
    if Bp8 >= 16:
        n = max(n, 2)
        if n % 2:
            n += 1
    TB = _round_up(_cdiv(Bp8, n), 8)      # batch row tile (multiple of 8)
    Bp = n * TB                           # padded batch
    grid_b = n

    # Pre-transpose W -> [Ep, Lp]; zero-pad extra rows/cols (numerically identical).
    w_t = jnp.zeros((Ep, Lp), dtype=dtype).at[:E, :L].set(weight.T.astype(dtype))
    # Padded label slots get a huge negative bias (kept in f32!) -> exactly 0 prob.
    b_p = jnp.full((1, Lp), -1e30, dtype=jnp.float32).at[0, :L].set(
        bias.astype(jnp.float32))
    # Zero-pad inputs along batch and feature axes (skip copy if already aligned).
    if (Bp, Ep) == (B, E):
        x_p = extras
    else:
        x_p = jnp.zeros((Bp, Ep), dtype=dtype).at[:B, :E].set(extras)

    out_itemsize = jnp.dtype(dtype).itemsize
    cost = pl.CostEstimate(
        flops=2 * Bp * Ep * Lp,
        transcendentals=Bp * Lp,          # exp per (padded) logit
        bytes_accessed=(x_p.size * x_p.dtype.itemsize
                        + w_t.size * w_t.dtype.itemsize
                        + b_p.size * b_p.dtype.itemsize
                        + Bp * Lp * out_itemsize),
    )

    out_p = pl.pallas_call(
        _linear_softmax_kernel,
        out_shape=jax.ShapeDtypeStruct((Bp, Lp), dtype),
        grid=(grid_b,),
        in_specs=[
            pl.BlockSpec((TB, Ep), lambda i: (i, 0)),   # x: tiled over batch
            pl.BlockSpec((Ep, Lp), lambda i: (0, 0)),   # W^T: grid-invariant (resident)
            pl.BlockSpec((1, Lp), lambda i: (0, 0)),    # bias: grid-invariant (resident)
        ],
        out_specs=pl.BlockSpec((TB, Lp), lambda i: (i, 0)),
        compiler_params=pltpu.CompilerParams(
            # Batch tiles are independent -> shard across v7x's 2 TCs; no-op on v5e/v6e.
            dimension_semantics=("parallel",),
        ),
        cost_estimate=cost,
    )(x_p, w_t, b_p)

    # Strip batch/label padding. Padded classes got exactly 0 prob, so real
    # classes sum to 1.
    return out_p[:B, :L]


def reference(extras, weight, bias):
    logits = extras @ weight.T + bias
    return jax.nn.softmax(logits, axis=-1)


if __name__ == "__main__":
    labels_count = 5
    extras_dim = 6

    key = jax.random.PRNGKey(0)
    kx, kw, kb, kx2 = jax.random.split(key, 4)

    # Deterministic synthetic parameters (shapes from nn.Linear(extras_dim, labels_count)).
    weight = jax.random.normal(kw, (labels_count, extras_dim), dtype=jnp.float32) * 0.1
    bias = jax.random.normal(kb, (labels_count,), dtype=jnp.float32) * 0.1

    # Case 1: tiny batch (module-scale shapes).
    batch = 8
    extras = jax.random.normal(kx, (batch, extras_dim), dtype=jnp.float32)
    proba = jax.block_until_ready(linear_multi_classifier(extras, weight, bias))
    ref = reference(extras, weight, bias)
    assert proba.shape == (batch, labels_count)
    assert jnp.allclose(proba, ref, atol=1e-3, rtol=1e-3)
    # Exact division in the kernel -> rows sum to 1 to f32 precision.
    assert jnp.allclose(jnp.sum(proba, axis=-1), 1.0, atol=1e-5)

    # Case 2: larger, non-aligned batch to exercise the grid + balanced tiling path.
    batch2 = 200
    extras2 = jax.random.normal(kx2, (batch2, extras_dim), dtype=jnp.float32)
    proba2 = jax.block_until_ready(
        linear_multi_classifier(extras2, weight, bias, block_b=64))
    ref2 = reference(extras2, weight, bias)
    assert proba2.shape == (batch2, labels_count)
    assert jnp.allclose(proba2, ref2, atol=1e-3, rtol=1e-3)
    assert jnp.allclose(jnp.sum(proba2, axis=-1), 1.0, atol=1e-5)

    print("KERNEL_OK")
</pallas_src>

<mosaic_0001>
module attributes {stable_mosaic.version = 11 : i64} {
  func.func @_linear_softmax_kernel(%arg0: i32, %arg1: memref<8x8xf32, #tpu.memory_space<vmem>>, %arg2: memref<8x128xf32, #tpu.memory_space<vmem>>, %arg3: memref<1x128xf32, #tpu.memory_space<vmem>>, %arg4: memref<8x128xf32, #tpu.memory_space<vmem>>) attributes {dimension_semantics = [#tpu.dimension_semantics<parallel>], iteration_bounds = array<i64: 1>, scalar_prefetch = 0 : i64, scratch_operands = 0 : i64, tpu.core_type = #tpu.core_type<tc>, window_params = [{transform_indices = @transform_0, window_bounds = array<i64: 8, 8>}, {pipeline_mode = #tpu.pipeline_mode<synchronous>, transform_indices = @transform_1, window_bounds = array<i64: 8, 128>}, {pipeline_mode = #tpu.pipeline_mode<synchronous>, transform_indices = @transform_2, window_bounds = array<i64: 1, 128>}, {transform_indices = @transform_3, window_bounds = array<i64: 8, 128>}]} {
    %c0 = arith.constant 0 : index
    %c0_0 = arith.constant 0 : index
    %0 = vector.load %arg1[%c0, %c0_0] : memref<8x8xf32, #tpu.memory_space<vmem>>, vector<8x8xf32>
    %c0_1 = arith.constant 0 : index
    %c0_2 = arith.constant 0 : index
    %1 = vector.load %arg2[%c0_1, %c0_2] : memref<8x128xf32, #tpu.memory_space<vmem>>, vector<8x128xf32>
    %cst = arith.constant dense<0.000000e+00> : vector<8x128xf32>
    %2 = tpu.matmul %0, %1, %cst {dimension_numbers = #tpu.dot_dimension_numbers<[1], [0], [0], [1], [0, 0, 1, 1], [], []>} : vector<8x8xf32>, vector<8x128xf32>, vector<8x128xf32> -> vector<8x128xf32>
    %c0_3 = arith.constant 0 : index
    %c0_4 = arith.constant 0 : index
    %3 = vector.load %arg3[%c0_3, %c0_4] : memref<1x128xf32, #tpu.memory_space<vmem>>, vector<1x128xf32>
    %4 = vector.broadcast %3 : vector<1x128xf32> to vector<8x128xf32>
    %5 = arith.addf %2, %4 : vector<8x128xf32>
    %cst_5 = arith.constant dense<0xFF800000> : vector<8xf32>
    %6 = vector.multi_reduction <maximumf>, %5, %cst_5 [1] : vector<8x128xf32> to vector<8xf32>
    %7 = vector.shape_cast %6 : vector<8xf32> to vector<8x1xf32>
    %8 = vector.broadcast %7 : vector<8x1xf32> to vector<8x128xf32>
    %9 = arith.subf %5, %8 : vector<8x128xf32>
    %10 = math.exp %9 : vector<8x128xf32>
    %cst_6 = arith.constant dense<0.000000e+00> : vector<8xf32>
    %11 = vector.multi_reduction <add>, %10, %cst_6 [1] : vector<8x128xf32> to vector<8xf32>
    %12 = vector.shape_cast %11 : vector<8xf32> to vector<8x1xf32>
    %13 = vector.broadcast %12 : vector<8x1xf32> to vector<8x128xf32>
    %14 = arith.divf %10, %13 : vector<8x128xf32>
    %c0_7 = arith.constant 0 : index
    %c0_8 = arith.constant 0 : index
    %15 = vector.load %arg4[%c0_7, %c0_8] : memref<8x128xf32, #tpu.memory_space<vmem>>, vector<8x128xf32>
    tpu.vector_store %arg4[%c0_7, %c0_8], %14 {strides = array<i32>} : memref<8x128xf32, #tpu.memory_space<vmem>>, vector<8x128xf32>,
    return
  }
  func.func @transform_0(%arg0: i32) -> (i32, i32) {
    %c0_i32 = arith.constant 0 : i32
    %c0_i32_0 = arith.constant 0 : i32
    return %arg0, %c0_i32 : i32, i32
  }
  func.func @transform_1(%arg0: i32) -> (i32, i32) {
    %c0_i32 = arith.constant 0 : i32
    %c0_i32_0 = arith.constant 0 : i32
    %c0_i32_1 = arith.constant 0 : i32
    return %c0_i32, %c0_i32_0 : i32, i32
  }
  func.func @transform_2(%arg0: i32) -> (i32, i32) {
    %c0_i32 = arith.constant 0 : i32
    %c0_i32_0 = arith.constant 0 : i32
    %c0_i32_1 = arith.constant 0 : i32
    return %c0_i32, %c0_i32_0 : i32, i32
  }
  func.func @transform_3(%arg0: i32) -> (i32, i32) {
    %c0_i32 = arith.constant 0 : i32
    %c0_i32_0 = arith.constant 0 : i32
    return %arg0, %c0_i32 : i32, i32
  }
}

</mosaic_0001>

<llo_original>
// kernel: tpu_custom_call.1
$region0: #{tpu_custom_call.1}
  #allocation0 [shape = 'u32[]', space=smem, size = 0x4, offset = 0x4, fixed_abs, tag = 'smem constant byte address 0x4 - core index']
  #allocation1 [shape = 'u32[144,128]{1,0:T(1,128)}', space=vmem, size = 0x12000, scoped, tag = 'internal scratch']
  %s0 = inlined_call_operand.hbm [shape: f32[8,8], index: 0, kind: input, shape index: {}]
  %s1 = inlined_call_operand.hbm [shape: f32[8,128], index: 1, kind: input, shape index: {}]
  %s2 = inlined_call_operand.vmem [shape: f32[1,128], index: 2, kind: input, shape index: {}]
  %s3 = inlined_call_operand.hbm [shape: f32[8,128], index: 3, kind: output, shape index: {}]
  %s4 = sld [smem:[#allocation0]]
  $region30: #{tpu_custom_call.1} parent=0
    _
  %s6 = ssub.s32 1, %s4
  %s7 = scalar_select 0, %s6, %s4
  $region1: #{tpu_custom_call.1} parent=0
    #allocation2 [shape = 'u8[4096]{0}', space=vmem, size = 0x1000, scoped, tag = 'input window, operand 0, single buffered']
    #allocation3 [shape = 's32[1]{0}', space=sflag, size = 0x4, scoped, tag = 'scoped memory for tpu_custom_call.1']
    #allocation4 [shape = 's32[1]{0}', space=sflag, size = 0x4, scoped, tag = 'scoped memory for tpu_custom_call.1']
    #allocation5 [shape = 'u8[4096]{0}', space=vmem, size = 0x1000, scoped, tag = 'input window, operand 1, single buffered']
    #allocation6 [shape = 's32[1]{0}', space=sflag, size = 0x4, scoped, tag = 'scoped memory for tpu_custom_call.1']
    #allocation7 [shape = 'u8[4096]{0}', space=vmem, size = 0x1000, scoped, tag = 'output window, operand 0, single buffered']
    %8 = vsyncpa [#allocation3], 0
    %9 = vsyncpa [#allocation6], 0
    %10 = vsyncpa [#allocation4], 0
    // Predicated region
    $region2: #{tpu_custom_call.1} parent=1 // pred_check
      _
    $region3: #{tpu_custom_call.1} parent=1 // pred_check_branch
      %12 = sbr.rel (0) target = $region5
    $region4: #{tpu_custom_call.1} parent=1 // pred_region
      %s14 = ssub.s32 128, 128
      %15 = vsyncadd [#allocation3], %s14
      %s17 = sshll.u32 [#allocation2], 4
      %s18 = int_to_ptr.vmem [resolvable:$true] %s17
      %20 = dma.hbm_to_vmem [thread:$0]  %s0, 128, %s18, [#allocation3]
    $region5: #{tpu_custom_call.1} parent=1 // pred_fallthru
      _
    // Predicated region
    $region6: #{tpu_custom_call.1} parent=1 // pred_check
      _
    $region7: #{tpu_custom_call.1} parent=1 // pred_check_branch
      %22 = sbr.rel (0) target = $region9
    $region8: #{tpu_custom_call.1} parent=1 // pred_region
      %s24 = ssub.s32 128, 128
      %25 = vsyncadd [#allocation6], %s24
      %s27 = sshll.u32 [#allocation5], 4
      %s28 = int_to_ptr.vmem [resolvable:$true] %s27
      %30 = dma.hbm_to_vmem [thread:$0]  %s1, 128, %s28, [#allocation6]
    $region9: #{tpu_custom_call.1} parent=1 // pred_fallthru
      _
    // Predicated region
    $region10: #{tpu_custom_call.1} parent=1 // pred_check
      _
    $region11: #{tpu_custom_call.1} parent=1 // pred_check_branch
      %32 = sbr.rel (0) target = $region13
    $region12: #{tpu_custom_call.1} parent=1 // pred_region
      _
    $region13: #{tpu_custom_call.1} parent=1 // pred_fallthru
      _
    // Predicated region
    $region14: #{tpu_custom_call.1} parent=1 // pred_check
      _
    $region15: #{tpu_custom_call.1} parent=1 // pred_check_branch
      %34 = sbr.rel (0) target = $region17
    $region16: #{tpu_custom_call.1} parent=1 // pred_region
      %35 = dma.done [#allocation3], 128
    $region17: #{tpu_custom_call.1} parent=1 // pred_fallthru
      _
    // Predicated region
    $region18: #{tpu_custom_call.1} parent=1 // pred_check
      _
    $region19: #{tpu_custom_call.1} parent=1 // pred_check_branch
      %37 = sbr.rel (0) target = $region21
    $region20: #{tpu_custom_call.1} parent=1 // pred_region
      %38 = dma.done [#allocation6], 128
    $region21: #{tpu_custom_call.1} parent=1 // pred_fallthru
      _
    %v39 = vld [vmem:[#allocation2] sm:$0xff]
    %v40 = vld [vmem:[#allocation5] sm:$0xff]
    %v41 = vld [vmem:[%s2] sm:$0x1]
    %v43 = vlaneseq
    %v44 = vshrl.u32 %v43, 7
    %v45 = vsub.s32 0, %v44
    %v46 = vrot.slane %v41, %v45
    %vm48 = vcmask 64512
    %v50 = vsel %vm48, %v39, 0
    %52 = vmatprep.subr.mxu0 0.0
    %53 = vmatpush1.msra.mxu0 %v40
    %54 = vmatprep.subr.mxu0 0.0
    %55 = vmatpush1.msra.mxu0 0.0
    %56 = vmatprep.subr.mxu0 0.0
    %57 = vmatpush1.msra.mxu0 0.0
    %58 = vmatprep.subr.mxu0 0.0
    %59 = vmatpush1.msra.mxu0 0.0
    %60 = vmatprep.subr.mxu0 0.0
    %61 = vmatpush1.msra.mxu0 0.0
    %62 = vmatprep.subr.mxu0 0.0
    %63 = vmatpush1.msra.mxu0 0.0
    %64 = vmatprep.subr.mxu0 0.0
    %65 = vmatpush1.msra.mxu0 0.0
    %66 = vmatprep.subr.mxu0 0.0
    %67 = vmatpush1.msra.mxu0 0.0
    %68 = vmatprep.subr.mxu0 0.0
    %69 = vmatpush1.msra.mxu0 0.0
    %70 = vmatprep.subr.mxu0 0.0
    %71 = vmatpush1.msra.mxu0 0.0
    %72 = vmatprep.subr.mxu0 0.0
    %73 = vmatpush1.msra.mxu0 0.0
    %74 = vmatprep.subr.mxu0 0.0
    %75 = vmatpush1.msra.mxu0 0.0
    %76 = vmatprep.subr.mxu0 0.0
    %77 = vmatpush1.msra.mxu0 0.0
    %78 = vmatprep.subr.mxu0 0.0
    %79 = vmatpush1.msra.mxu0 0.0
    %80 = vmatprep.subr.mxu0 0.0
    %81 = vmatpush1.msra.mxu0 0.0
    %82 = vmatprep.subr.mxu0 0.0
    %83 = vmatpush1.msra.mxu0 0.0
    %84 = vmatprep.subr.mxu0 0.0
    %85 = vmatpush1.msra.mxu0 0.0
    %86 = vmatprep.subr.mxu0 0.0
    %87 = vmatpush1.msra.mxu0 0.0
    %88 = vmatprep.subr.mxu0 0.0
    %89 = vmatpush1.msra.mxu0 0.0
    %90 = vmatprep.subr.mxu0 0.0
    %91 = vmatpush1.msra.mxu0 0.0
    %92 = vmatprep.subr.mxu0 0.0
    %93 = vmatpush1.msra.mxu0 0.0
    %94 = vmatprep.subr.mxu0 0.0
    %95 = vmatpush1.msra.mxu0 0.0
    %96 = vmatprep.subr.mxu0 0.0
    %97 = vmatpush1.msra.mxu0 0.0
    %98 = vmatprep.subr.mxu0 0.0
    %99 = vmatpush1.msra.mxu0 0.0
    %100 = vmatprep.subr.mxu0 0.0
    %101 = vmatpush1.msra.mxu0 0.0
    %102 = vmatprep.subr.mxu0 0.0
    %103 = vmatpush1.msra.mxu0 0.0
    %104 = vmatprep.subr.mxu0 0.0
    %105 = vmatpush1.msra.mxu0 0.0
    %106 = vmatprep.subr.mxu0 0.0
    %107 = vmatpush1.msra.mxu0 0.0
    %108 = vmatprep.subr.mxu0 0.0
    %109 = vmatpush1.msra.mxu0 0.0
    %110 = vmatprep.subr.mxu0 0.0
    %111 = vmatpush1.msra.mxu0 0.0
    %112 = vmatprep.subr.mxu0 0.0
    %113 = vmatpush1.msra.mxu0 0.0
    %114 = vmatprep.subr.mxu0 0.0
    %115 = vmatpush1.msra.mxu0 0.0
    %116 = vmatprep.mubr.f32.mxu0 0.0
    %117 = vmatmul.mubr.f32.gmra.mrb[0].mxu0 %v50
    %v118 = vpop.f32.mrb[0].mxu0
    %v119 = vadd.f32 %v46, %v118
    %v120 = vpop.f32.mrb[0].mxu0
    %121 = vdwg.mxu0
    %122 = vmax.xlane.f32.xlu0 %v119
    %v123 = vpop.xlane.xlu0 %122
    %v124 = vsub.f32 %v119, %v123
    %v125 = vmul.f32 %v124, 1.442695
    %v126 = vpow.pop %v125
    %127 = vadd.xlane.f32.xlu0 %v126
    %v128 = vpop.xlane.xlu0 %127
    %v129 = vrcp.pop %v128
    %v130 = vmul.f32 %v126, %v129
    %131 = vst [vmem:[#allocation7] sm:$0xff] %v130
    // Predicated region
    $region22: #{tpu_custom_call.1} parent=1 // pred_check
      _
    $region23: #{tpu_custom_call.1} parent=1 // pred_check_branch
      %133 = sbr.rel (0) target = $region25
    $region24: #{tpu_custom_call.1} parent=1 // pred_region
      %s135 = ssub.s32 128, 128
      %136 = vsyncadd [#allocation4], %s135
      %s138 = sshll.u32 [#allocation7], 4
      %s139 = int_to_ptr.vmem [resolvable:$true] %s138
      %141 = dma.vmem_to_hbm [thread:$0]  %s139, 128, %s3, [#allocation4]
    $region25: #{tpu_custom_call.1} parent=1 // pred_fallthru
      _
    // Predicated region
    $region26: #{tpu_custom_call.1} parent=1 // pred_check
      _
    $region27: #{tpu_custom_call.1} parent=1 // pred_check_branch
      %143 = sbr.rel (0) target = $region29
    $region28: #{tpu_custom_call.1} parent=1 // pred_region
      %144 = dma.done [#allocation4], 128
    $region29: #{tpu_custom_call.1} parent=1 // pred_fallthru
      _
    %145 = vsyncpa [#allocation3], 1
    %146 = vsyncpa [#allocation6], 1
    %147 = vsyncpa [#allocation4], 1

</llo_original>
